<compile_context>
chip_gen: v7x
topology: tpu7x:2x2x1
jax: 0.10.0
libtpu: 0.0.40
codegen_flags: <defaults>
</compile_context>

<pallas_src>
import jax
import jax.numpy as jnp
from jax.experimental import pallas as pl
from jax.experimental.pallas import tpu as pltpu


def _copy_kernel(x_ref, o_ref):
    # Pure DMA-in / DMA-out copy; no VPU reformatting in the body (v5e: 1 vst slot).
    o_ref[...] = x_ref[...]


_LANE = 128
# Per-tile byte budget.  2 buffers x (in tile + out tile) = 4x this, i.e. ~16 MiB,
# comfortably inside the default scoped VMEM limit on v5e/v6e/v7x.
_TILE_BYTES_TARGET = 4 * 1024 * 1024


def _flatten_lane_dense(x: jax.Array) -> jax.Array:
    """Reshape x to a 2D slab (rows, width) with width a large multiple of 128
    if the element count allows; otherwise fall back to (-1, last_dim)."""
    n = x.size
    for width in (8192, 4096, 2048, 1024, 512, 384, 256, _LANE):
        if n % width == 0:
            return x.reshape(n // width, width)
    # Fallback for odd element counts: keep the feature dim as the lane axis.
    return x.reshape(-1, x.shape[-1])


def base_speech_model_forward(x: jax.Array) -> jax.Array:
    """Identity pass over the input tensor (the only defined semantics of the
    abstract base module), executed as a tiled, lane-dense, buffer-aliased
    Pallas copy so it scales past toy shapes without a second HBM buffer."""
    orig_shape = x.shape
    x2 = _flatten_lane_dense(x)
    rows, width = x2.shape
    itemsize = jnp.dtype(x2.dtype).itemsize

    # Largest multiple-of-8 row tile within the per-tile byte budget.
    budget_rows = max(8, (_TILE_BYTES_TARGET // (width * itemsize)) // 8 * 8)
    if rows % 8 == 0:
        tile_rows = min(rows, budget_rows)
    else:
        # Row count not 8-aligned (only happens for tiny/odd shapes): a
        # full-extent block along rows is always a legal block shape.
        tile_rows = rows
    grid = (pl.cdiv(rows, tile_rows),)

    y2 = pl.pallas_call(
        _copy_kernel,
        out_shape=jax.ShapeDtypeStruct((rows, width), x2.dtype),
        grid=grid,
        in_specs=[pl.BlockSpec((tile_rows, width), lambda i: (i, 0))],
        out_specs=pl.BlockSpec((tile_rows, width), lambda i: (i, 0)),
        # Output aliases the input buffer: no extra HBM output allocation.
        input_output_aliases={0: 0},
        compiler_params=pltpu.CompilerParams(
            dimension_semantics=("parallel",),
        ),
    )(x2)
    return y2.reshape(orig_shape)


def output_length(input_length: int) -> int:
    """Mirrors BaseSpeechModel.output_length: identity mapping."""
    return input_length


if __name__ == "__main__":
    key = jax.random.PRNGKey(0)
    k_small, k_large = jax.random.split(key)

    # Small speech-like input: batch=2, seq=8, feat=32.
    x_small = jax.random.normal(k_small, (2, 8, 32), dtype=jnp.float32)
    # Regenerate the expected values separately (the pallas input is aliased/donated,
    # so we never rely on the original buffer after the call).
    expected_small = jax.random.normal(k_small, (2, 8, 32), dtype=jnp.float32)

    y_small = jax.block_until_ready(base_speech_model_forward(x_small))
    assert y_small.shape == expected_small.shape and y_small.dtype == expected_small.dtype
    assert bool(jnp.allclose(y_small, expected_small))

    # Larger speech-like input (batch=8, seq=2048, mel=80) to exercise the
    # lane-dense flatten + multi-tile grid path (rows=160 -> tile=128, grid=2).
    x_large = jax.random.normal(k_large, (8, 2048, 80), dtype=jnp.float32)
    expected_large = jax.random.normal(k_large, (8, 2048, 80), dtype=jnp.float32)

    y_large = jax.block_until_ready(base_speech_model_forward(x_large))
    assert y_large.shape == expected_large.shape and y_large.dtype == expected_large.dtype
    assert bool(jnp.allclose(y_large, expected_large))

    # output_length contract: identity.
    assert output_length(8) == 8
    assert output_length(2048) == 2048

    print("KERNEL_OK")
</pallas_src>

<mosaic_0001>
module attributes {stable_mosaic.version = 11 : i64} {
  func.func @_copy_kernel(%arg0: i32, %arg1: memref<1x512xf32, #tpu.memory_space<vmem>>, %arg2: memref<1x512xf32, #tpu.memory_space<vmem>>) attributes {dimension_semantics = [#tpu.dimension_semantics<parallel>], iteration_bounds = array<i64: 1>, scalar_prefetch = 0 : i64, scratch_operands = 0 : i64, tpu.core_type = #tpu.core_type<tc>, window_params = [{transform_indices = @transform_0, window_bounds = array<i64: 1, 512>}, {transform_indices = @transform_1, window_bounds = array<i64: 1, 512>}]} {
    %c0 = arith.constant 0 : index
    %c0_0 = arith.constant 0 : index
    %0 = vector.load %arg1[%c0, %c0_0] : memref<1x512xf32, #tpu.memory_space<vmem>>, vector<1x512xf32>
    %c0_1 = arith.constant 0 : index
    %c0_2 = arith.constant 0 : index
    %1 = vector.load %arg2[%c0_1, %c0_2] : memref<1x512xf32, #tpu.memory_space<vmem>>, vector<1x512xf32>
    tpu.vector_store %arg2[%c0_1, %c0_2], %0 {strides = array<i32>} : memref<1x512xf32, #tpu.memory_space<vmem>>, vector<1x512xf32>,
    return
  }
  func.func @transform_0(%arg0: i32) -> (i32, i32) {
    %c0_i32 = arith.constant 0 : i32
    %c0_i32_0 = arith.constant 0 : i32
    return %arg0, %c0_i32 : i32, i32
  }
  func.func @transform_1(%arg0: i32) -> (i32, i32) {
    %c0_i32 = arith.constant 0 : i32
    %c0_i32_0 = arith.constant 0 : i32
    return %arg0, %c0_i32 : i32, i32
  }
}

</mosaic_0001>

<llo_original>
// kernel: tpu_custom_call.1
$region0: #{tpu_custom_call.1}
  #allocation0 [shape = 'u32[]', space=smem, size = 0x4, offset = 0x4, fixed_abs, tag = 'smem constant byte address 0x4 - core index']
  #allocation1 [shape = 'u32[144,128]{1,0:T(1,128)}', space=vmem, size = 0x12000, scoped, tag = 'internal scratch']
  %s0 = inlined_call_operand.hbm [shape: f32[1,512], index: 0, kind: input, shape index: {}, may-alias: {0,1}]
  %s1 = inlined_call_operand.hbm [shape: f32[1,512], index: 1, kind: output, shape index: {}, may-alias: {0,1}]
  %s2 = sld [smem:[#allocation0]]
  $region18: #{tpu_custom_call.1} parent=0
    _
  %s4 = ssub.s32 1, %s2
  %s5 = scalar_select 0, %s4, %s2
  $region1: #{tpu_custom_call.1} parent=0
    #allocation2 [shape = 'u8[2048]{0}', space=vmem, size = 0x800, scoped, tag = 'input window, operand 0, single buffered']
    #allocation3 [shape = 's32[1]{0}', space=sflag, size = 0x4, scoped, tag = 'scoped memory for tpu_custom_call.1']
    #allocation4 [shape = 's32[1]{0}', space=sflag, size = 0x4, scoped, tag = 'scoped memory for tpu_custom_call.1']
    #allocation5 [shape = 'u8[2048]{0}', space=vmem, size = 0x800, scoped, tag = 'output window, operand 0, single buffered']
    %6 = vsyncpa [#allocation3], 0
    %7 = vsyncpa [#allocation4], 0
    // Predicated region
    $region2: #{tpu_custom_call.1} parent=1 // pred_check
      _
    $region3: #{tpu_custom_call.1} parent=1 // pred_check_branch
      %9 = sbr.rel (0) target = $region5
    $region4: #{tpu_custom_call.1} parent=1 // pred_region
      %s11 = ssub.s32 64, 64
      %12 = vsyncadd [#allocation3], %s11
      %s14 = sshll.u32 [#allocation2], 4
      %s15 = int_to_ptr.vmem [resolvable:$true] %s14
      %17 = dma.hbm_to_vmem [thread:$0]  %s0, 64, %s15, [#allocation3]
    $region5: #{tpu_custom_call.1} parent=1 // pred_fallthru
      _
    // Predicated region
    $region6: #{tpu_custom_call.1} parent=1 // pred_check
      _
    $region7: #{tpu_custom_call.1} parent=1 // pred_check_branch
      %19 = sbr.rel (0) target = $region9
    $region8: #{tpu_custom_call.1} parent=1 // pred_region
      %20 = dma.done [#allocation3], 64
    $region9: #{tpu_custom_call.1} parent=1 // pred_fallthru
      _
    %v21 = vld [vmem:[#allocation2] sm:$0xf]
    %v22 = vlaneseq
    %vm23 = vcmp.ge.s32.totalorder %v22, 0
    %vm24 = vcmp.lt.s32.totalorder %v22, 512
    %vm25 = vmand %vm23, %vm24
    %26 = vst.msk [vmem:[#allocation5] sm:$0xf] %vm25, %v21
    // Predicated region
    $region10: #{tpu_custom_call.1} parent=1 // pred_check
      _
    $region11: #{tpu_custom_call.1} parent=1 // pred_check_branch
      %28 = sbr.rel (0) target = $region13
    $region12: #{tpu_custom_call.1} parent=1 // pred_region
      %s30 = ssub.s32 64, 64
      %31 = vsyncadd [#allocation4], %s30
      %s33 = sshll.u32 [#allocation5], 4
      %s34 = int_to_ptr.vmem [resolvable:$true] %s33
      %36 = dma.vmem_to_hbm [thread:$0]  %s34, 64, %s1, [#allocation4]
    $region13: #{tpu_custom_call.1} parent=1 // pred_fallthru
      _
    // Predicated region
    $region14: #{tpu_custom_call.1} parent=1 // pred_check
      _
    $region15: #{tpu_custom_call.1} parent=1 // pred_check_branch
      %38 = sbr.rel (0) target = $region17
    $region16: #{tpu_custom_call.1} parent=1 // pred_region
      %39 = dma.done [#allocation4], 64
    $region17: #{tpu_custom_call.1} parent=1 // pred_fallthru
      _
    %40 = vsyncpa [#allocation3], 1
    %41 = vsyncpa [#allocation4], 1

</llo_original>
